<compile_context>
chip_gen: v6e
topology: v6e:2x2x1
jax: 0.10.0
libtpu: 0.0.40
codegen_flags: <defaults>
</compile_context>

<pallas_src>
import functools

import jax
import jax.numpy as jnp
from jax.experimental import pallas as pl
from jax.experimental.pallas import tpu as pltpu


# Tables at or below this size are loaded into VMEM once and stay resident
# across all grid steps.  16 MiB stays comfortably under the default scoped
# VMEM limit on every generation (32 MiB scoped on v6e/v7x; 64 MiB physical
# on v7x), leaving room for the double-buffered output blocks.
_VMEM_TABLE_BUDGET_BYTES = 16 * 1024 * 1024


def _rows_per_block(dtype):
    # f32 packs 8 sublanes per vreg, bf16 packs 16 — keep output blocks
    # vreg-dense so stores are unmasked.
    return 16 if jnp.dtype(dtype).itemsize == 2 else 8


def _gather_vmem_kernel(labels_ref, table_ref, out_ref):
    """Table is VMEM-resident; gather TB rows per grid step via VMEM copies.

    labels_ref: SMEM (B_pad,) int32 scalar-prefetch ref
    table_ref : VMEM (V, H) full table (constant block index -> loaded once)
    out_ref   : VMEM (TB, H) output block for this grid step
    """
    i = pl.program_id(0)
    tb = out_ref.shape[0]
    base = i * tb
    for t in range(tb):  # static unroll; tb is small (8 / 16)
        lbl = labels_ref[base + t]
        out_ref[pl.ds(t, 1), :] = table_ref[pl.ds(lbl, 1), :]


def _gather_dma_kernel(labels_ref, table_hbm_ref, out_ref, copy_sems):
    """Table stays in HBM; issue TB row-gather DMAs per grid step, then wait.

    labels_ref   : SMEM (B_pad,) int32 scalar-prefetch ref
    table_hbm_ref: HBM (V, H) ref (memory_space=pl.ANY, no auto-DMA)
    out_ref      : VMEM (TB, H) output block (DMA'd into directly)
    copy_sems    : DMA semaphores, shape (TB,)
    """
    i = pl.program_id(0)
    tb = out_ref.shape[0]
    base = i * tb
    # Start all TB row fetches so their HBM latencies overlap...
    for t in range(tb):
        lbl = labels_ref[base + t]
        pltpu.make_async_copy(
            table_hbm_ref.at[lbl], out_ref.at[t], copy_sems.at[t]
        ).start()
    # ...then wait for all of them before the block is written back.
    for t in range(tb):
        lbl = labels_ref[base + t]
        pltpu.make_async_copy(
            table_hbm_ref.at[lbl], out_ref.at[t], copy_sems.at[t]
        ).wait()


@functools.partial(jax.jit, static_argnames=("force_dma_gather",))
def _embedding_lookup_pallas(labels, table, force_dma_gather=False):
    num_rows, hidden = table.shape  # hidden derived from the table itself
    batch = labels.shape[0]
    tb = _rows_per_block(table.dtype)

    # Clamp so a CFG label without a CFG row (dropout_prob == 0) or a
    # corrupted/negative label can never drive an out-of-bounds DMA.
    labels = jnp.clip(labels.astype(jnp.int32), 0, num_rows - 1)

    # Pad the batch so every output block is a dense (tb, H) tile.
    padded_batch = ((batch + tb - 1) // tb) * tb
    if padded_batch != batch:
        labels = jnp.pad(labels, (0, padded_batch - batch))

    grid = (padded_batch // tb,)
    out_shape = jax.ShapeDtypeStruct((padded_batch, hidden), table.dtype)
    out_spec = pl.BlockSpec((tb, hidden), lambda i, lbl: (i, 0))
    table_bytes = num_rows * hidden * table.dtype.itemsize

    if force_dma_gather or table_bytes > _VMEM_TABLE_BUDGET_BYTES:
        # Large table: keep it in HBM and gather rows with manual DMAs.
        out = pl.pallas_call(
            _gather_dma_kernel,
            out_shape=out_shape,
            grid_spec=pltpu.PrefetchScalarGridSpec(
                num_scalar_prefetch=1,
                grid=grid,
                in_specs=[pl.BlockSpec(memory_space=pl.ANY)],
                out_specs=out_spec,
                scratch_shapes=[pltpu.SemaphoreType.DMA((tb,))],
            ),
            compiler_params=pltpu.CompilerParams(
                dimension_semantics=("parallel",),
            ),
        )(labels, table)
    else:
        # Small table: make it VMEM-resident (constant block index -> one DMA)
        # and gather rows with cheap VMEM-local copies.
        out = pl.pallas_call(
            _gather_vmem_kernel,
            out_shape=out_shape,
            grid_spec=pltpu.PrefetchScalarGridSpec(
                num_scalar_prefetch=1,
                grid=grid,
                in_specs=[
                    pl.BlockSpec((num_rows, hidden), lambda i, lbl: (0, 0)),
                ],
                out_specs=out_spec,
            ),
            compiler_params=pltpu.CompilerParams(
                dimension_semantics=("parallel",),
            ),
        )(labels, table)

    return out[:batch] if padded_batch != batch else out


class LabelEmbedder:
    """JAX/Pallas port of the PyTorch LabelEmbedder module."""

    def __init__(self, num_classes, hidden_size, dropout_prob, key,
                 dtype=jnp.float32):
        use_cfg_embedding = int(dropout_prob > 0)
        # nn.Embedding default init ~ N(0, 1); deterministic from `key`.
        # (Use dtype=jnp.bfloat16 to halve HBM/VMEM traffic; the kernel then
        #  automatically uses 16-row blocks.)
        self.embedding_table = jax.random.normal(
            key, (num_classes + use_cfg_embedding, hidden_size)
        ).astype(dtype)
        self.num_classes = num_classes
        self.hidden_size = hidden_size
        self.dropout_prob = dropout_prob

    def token_drop(self, labels, drop_key=None, force_drop_ids=None):
        if force_drop_ids is None:
            drop_ids = (
                jax.random.uniform(drop_key, (labels.shape[0],)) < self.dropout_prob
            )
        else:
            drop_ids = force_drop_ids == 1
        return jnp.where(drop_ids, self.num_classes, labels)

    def __call__(self, labels, train, drop_key=None, force_drop_ids=None):
        labels = labels.astype(jnp.int32)
        use_dropout = self.dropout_prob > 0
        if (train and use_dropout) or (force_drop_ids is not None):
            labels = self.token_drop(labels, drop_key, force_drop_ids)
        # Hot path: batched row gather from the embedding table in Pallas.
        return _embedding_lookup_pallas(labels, self.embedding_table)


if __name__ == "__main__":
    num_classes = 10
    hidden_size = 128   # lane-aligned
    dropout_prob = 0.1
    batch = 8

    key = jax.random.PRNGKey(0)
    k_table, k_labels, k_drop = jax.random.split(key, 3)

    embedder = LabelEmbedder(num_classes, hidden_size, dropout_prob, k_table)
    labels = jax.random.randint(k_labels, (batch,), 0, num_classes, dtype=jnp.int32)

    # --- eval path (no dropout), VMEM-resident table ---
    out_eval = jax.block_until_ready(embedder(labels, train=False))
    ref_eval = jnp.take(embedder.embedding_table, labels, axis=0)
    assert out_eval.shape == (batch, hidden_size)
    assert jnp.allclose(out_eval, ref_eval)

    # --- train path with CFG token drop (deterministic key) ---
    out_train = jax.block_until_ready(embedder(labels, train=True, drop_key=k_drop))
    dropped_labels = embedder.token_drop(labels, drop_key=k_drop)
    ref_train = jnp.take(embedder.embedding_table, dropped_labels, axis=0)
    assert jnp.allclose(out_train, ref_train)

    # --- force_drop_ids path ---
    force_ids = jnp.array([1, 0, 1, 0, 0, 0, 1, 0], dtype=jnp.int32)
    out_force = jax.block_until_ready(
        embedder(labels, train=False, force_drop_ids=force_ids)
    )
    forced_labels = jnp.where(force_ids == 1, num_classes, labels)
    ref_force = jnp.take(embedder.embedding_table, forced_labels, axis=0)
    assert jnp.allclose(out_force, ref_force)

    # --- batch not a multiple of the block size (padding path) ---
    labels_odd = labels[:5]
    out_odd = jax.block_until_ready(
        _embedding_lookup_pallas(labels_odd, embedder.embedding_table)
    )
    assert out_odd.shape == (5, hidden_size)
    assert jnp.allclose(out_odd, jnp.take(embedder.embedding_table, labels_odd, axis=0))

    # --- HBM DMA-gather fallback (used automatically for large tables) ---
    out_dma = jax.block_until_ready(
        _embedding_lookup_pallas(labels, embedder.embedding_table,
                                 force_dma_gather=True)
    )
    assert jnp.allclose(out_dma, ref_eval)

    print("KERNEL_OK")
</pallas_src>

<mosaic_0001>
module attributes {stable_mosaic.version = 11 : i64} {
  func.func @_gather_vmem_kernel(%arg0: i32, %arg1: memref<8xi32, #tpu.memory_space<smem>>, %arg2: memref<11x128xf32, #tpu.memory_space<vmem>>, %arg3: memref<8x128xf32, #tpu.memory_space<vmem>>) attributes {dimension_semantics = [#tpu.dimension_semantics<parallel>], iteration_bounds = array<i64: 1>, scalar_prefetch = 1 : i64, scratch_operands = 0 : i64, tpu.core_type = #tpu.core_type<tc>, window_params = [{pipeline_mode = #tpu.pipeline_mode<synchronous>, transform_indices = @transform_0, window_bounds = array<i64: 11, 128>}, {transform_indices = @transform_1, window_bounds = array<i64: 8, 128>}]} {
    %c8_i32 = arith.constant 8 : i32
    %0 = arith.muli %arg0, %c8_i32 : i32
    %c0_i32 = arith.constant 0 : i32
    %1 = arith.addi %0, %c0_i32 : i32
    %2 = arith.index_cast %1 : i32 to index
    %3 = memref.load %arg1[%2] : memref<8xi32, #tpu.memory_space<smem>>
    %4 = arith.index_cast %3 : i32 to index
    %c0 = arith.constant 0 : index
    %5 = vector.load %arg2[%4, %c0] : memref<11x128xf32, #tpu.memory_space<vmem>>, vector<1x128xf32>
    %c0_0 = arith.constant 0 : index
    %c0_1 = arith.constant 0 : index
    %6 = vector.load %arg3[%c0_0, %c0_1] : memref<8x128xf32, #tpu.memory_space<vmem>>, vector<1x128xf32>
    tpu.vector_store %arg3[%c0_0, %c0_1], %5 {strides = array<i32>} : memref<8x128xf32, #tpu.memory_space<vmem>>, vector<1x128xf32>,
    %c1_i32 = arith.constant 1 : i32
    %7 = arith.addi %0, %c1_i32 : i32
    %8 = arith.index_cast %7 : i32 to index
    %9 = memref.load %arg1[%8] : memref<8xi32, #tpu.memory_space<smem>>
    %10 = arith.index_cast %9 : i32 to index
    %c0_2 = arith.constant 0 : index
    %11 = vector.load %arg2[%10, %c0_2] : memref<11x128xf32, #tpu.memory_space<vmem>>, vector<1x128xf32>
    %c1 = arith.constant 1 : index
    %c0_3 = arith.constant 0 : index
    %12 = vector.load %arg3[%c1, %c0_3] : memref<8x128xf32, #tpu.memory_space<vmem>>, vector<1x128xf32>
    tpu.vector_store %arg3[%c1, %c0_3], %11 {strides = array<i32>} : memref<8x128xf32, #tpu.memory_space<vmem>>, vector<1x128xf32>,
    %c2_i32 = arith.constant 2 : i32
    %13 = arith.addi %0, %c2_i32 : i32
    %14 = arith.index_cast %13 : i32 to index
    %15 = memref.load %arg1[%14] : memref<8xi32, #tpu.memory_space<smem>>
    %16 = arith.index_cast %15 : i32 to index
    %c0_4 = arith.constant 0 : index
    %17 = vector.load %arg2[%16, %c0_4] : memref<11x128xf32, #tpu.memory_space<vmem>>, vector<1x128xf32>
    %c2 = arith.constant 2 : index
    %c0_5 = arith.constant 0 : index
    %18 = vector.load %arg3[%c2, %c0_5] : memref<8x128xf32, #tpu.memory_space<vmem>>, vector<1x128xf32>
    tpu.vector_store %arg3[%c2, %c0_5], %17 {strides = array<i32>} : memref<8x128xf32, #tpu.memory_space<vmem>>, vector<1x128xf32>,
    %c3_i32 = arith.constant 3 : i32
    %19 = arith.addi %0, %c3_i32 : i32
    %20 = arith.index_cast %19 : i32 to index
    %21 = memref.load %arg1[%20] : memref<8xi32, #tpu.memory_space<smem>>
    %22 = arith.index_cast %21 : i32 to index
    %c0_6 = arith.constant 0 : index
    %23 = vector.load %arg2[%22, %c0_6] : memref<11x128xf32, #tpu.memory_space<vmem>>, vector<1x128xf32>
    %c3 = arith.constant 3 : index
    %c0_7 = arith.constant 0 : index
    %24 = vector.load %arg3[%c3, %c0_7] : memref<8x128xf32, #tpu.memory_space<vmem>>, vector<1x128xf32>
    tpu.vector_store %arg3[%c3, %c0_7], %23 {strides = array<i32>} : memref<8x128xf32, #tpu.memory_space<vmem>>, vector<1x128xf32>,
    %c4_i32 = arith.constant 4 : i32
    %25 = arith.addi %0, %c4_i32 : i32
    %26 = arith.index_cast %25 : i32 to index
    %27 = memref.load %arg1[%26] : memref<8xi32, #tpu.memory_space<smem>>
    %28 = arith.index_cast %27 : i32 to index
    %c0_8 = arith.constant 0 : index
    %29 = vector.load %arg2[%28, %c0_8] : memref<11x128xf32, #tpu.memory_space<vmem>>, vector<1x128xf32>
    %c4 = arith.constant 4 : index
    %c0_9 = arith.constant 0 : index
    %30 = vector.load %arg3[%c4, %c0_9] : memref<8x128xf32, #tpu.memory_space<vmem>>, vector<1x128xf32>
    tpu.vector_store %arg3[%c4, %c0_9], %29 {strides = array<i32>} : memref<8x128xf32, #tpu.memory_space<vmem>>, vector<1x128xf32>,
    %c5_i32 = arith.constant 5 : i32
    %31 = arith.addi %0, %c5_i32 : i32
    %32 = arith.index_cast %31 : i32 to index
    %33 = memref.load %arg1[%32] : memref<8xi32, #tpu.memory_space<smem>>
    %34 = arith.index_cast %33 : i32 to index
    %c0_10 = arith.constant 0 : index
    %35 = vector.load %arg2[%34, %c0_10] : memref<11x128xf32, #tpu.memory_space<vmem>>, vector<1x128xf32>
    %c5 = arith.constant 5 : index
    %c0_11 = arith.constant 0 : index
    %36 = vector.load %arg3[%c5, %c0_11] : memref<8x128xf32, #tpu.memory_space<vmem>>, vector<1x128xf32>
    tpu.vector_store %arg3[%c5, %c0_11], %35 {strides = array<i32>} : memref<8x128xf32, #tpu.memory_space<vmem>>, vector<1x128xf32>,
    %c6_i32 = arith.constant 6 : i32
    %37 = arith.addi %0, %c6_i32 : i32
    %38 = arith.index_cast %37 : i32 to index
    %39 = memref.load %arg1[%38] : memref<8xi32, #tpu.memory_space<smem>>
    %40 = arith.index_cast %39 : i32 to index
    %c0_12 = arith.constant 0 : index
    %41 = vector.load %arg2[%40, %c0_12] : memref<11x128xf32, #tpu.memory_space<vmem>>, vector<1x128xf32>
    %c6 = arith.constant 6 : index
    %c0_13 = arith.constant 0 : index
    %42 = vector.load %arg3[%c6, %c0_13] : memref<8x128xf32, #tpu.memory_space<vmem>>, vector<1x128xf32>
    tpu.vector_store %arg3[%c6, %c0_13], %41 {strides = array<i32>} : memref<8x128xf32, #tpu.memory_space<vmem>>, vector<1x128xf32>,
    %c7_i32 = arith.constant 7 : i32
    %43 = arith.addi %0, %c7_i32 : i32
    %44 = arith.index_cast %43 : i32 to index
    %45 = memref.load %arg1[%44] : memref<8xi32, #tpu.memory_space<smem>>
    %46 = arith.index_cast %45 : i32 to index
    %c0_14 = arith.constant 0 : index
    %47 = vector.load %arg2[%46, %c0_14] : memref<11x128xf32, #tpu.memory_space<vmem>>, vector<1x128xf32>
    %c7 = arith.constant 7 : index
    %c0_15 = arith.constant 0 : index
    %48 = vector.load %arg3[%c7, %c0_15] : memref<8x128xf32, #tpu.memory_space<vmem>>, vector<1x128xf32>
    tpu.vector_store %arg3[%c7, %c0_15], %47 {strides = array<i32>} : memref<8x128xf32, #tpu.memory_space<vmem>>, vector<1x128xf32>,
    return
  }
  func.func @transform_0(%arg0: i32, %arg1: memref<8xi32, #tpu.memory_space<smem>>) -> (i32, i32) {
    %c0_i32 = arith.constant 0 : i32
    %c0_i32_0 = arith.constant 0 : i32
    %c0_i32_1 = arith.constant 0 : i32
    return %c0_i32, %c0_i32_0 : i32, i32
  }
  func.func @transform_1(%arg0: i32, %arg1: memref<8xi32, #tpu.memory_space<smem>>) -> (i32, i32) {
    %c0_i32 = arith.constant 0 : i32
    %c0_i32_0 = arith.constant 0 : i32
    return %arg0, %c0_i32 : i32, i32
  }
}

</mosaic_0001>

<llo_original>
// kernel: _embedding_lookup_pallas.1
$region0: #{_embedding_lookup_pallas.1}
  #allocation0 [shape = 'u32[]', space=smem, size = 0x4, offset = 0x4, fixed_abs, tag = 'smem constant byte address 0x4 - core index']
  #allocation1 [shape = 'u32[144,128]{1,0:T(1,128)}', space=vmem, size = 0x12000, scoped, tag = 'internal scratch']
  #allocation2 [shape = 's32[1]{0}', space=sflag, size = 0x4, scoped, tag = 'scoped memory for _embedding_lookup_pallas.1']
  #allocation3 [shape = 'u8[512]{0}', space=smem, size = 0x200, scoped, tag = 'prefetched SMEM operand 0']
  %s0 = inlined_call_operand.vmem [shape: s32[8], index: 0, kind: input, shape index: {}]
  %s1 = inlined_call_operand.hbm [shape: f32[11,128], index: 1, kind: input, shape index: {}]
  %s2 = inlined_call_operand.hbm [shape: f32[8,128], index: 2, kind: output, shape index: {}]
  %s3 = sld [smem:[#allocation0]]
  $region18: #{_embedding_lookup_pallas.1} parent=0
    _
  %s5 = ssub.s32 1, %s3
  %s6 = scalar_select 0, %s5, %s3
  %s7 = sshll.u32 %s0, 4
  %s8 = int_to_ptr.vmem [resolvable:$true] %s7
  %10 = dma.vmem_to_smem %s8, 16, [#allocation3], [#allocation2]
  %11 = dma.done [#allocation2], 16
  %12 = sfence
  $region1: #{_embedding_lookup_pallas.1} parent=0
    #allocation4 [shape = 'u8[8192]{0}', space=vmem, size = 0x2000, scoped, tag = 'input window, operand 1, single buffered']
    #allocation5 [shape = 's32[1]{0}', space=sflag, size = 0x4, scoped, tag = 'scoped memory for _embedding_lookup_pallas.1']
    #allocation6 [shape = 's32[1]{0}', space=sflag, size = 0x4, scoped, tag = 'scoped memory for _embedding_lookup_pallas.1']
    #allocation7 [shape = 'u8[4096]{0}', space=vmem, size = 0x1000, scoped, tag = 'output window, operand 0, single buffered']
    %13 = vsyncpa [#allocation5], 0
    %14 = vsyncpa [#allocation6], 0
    // Predicated region
    $region2: #{_embedding_lookup_pallas.1} parent=1 // pred_check
      _
    $region3: #{_embedding_lookup_pallas.1} parent=1 // pred_check_branch
      %16 = sbr.rel (0) target = $region5
    $region4: #{_embedding_lookup_pallas.1} parent=1 // pred_region
      %s18 = ssub.s32 256, 256
      %19 = vsyncadd [#allocation5], %s18
      %s20 = sshll.u32 [#allocation4], 4
      %s21 = int_to_ptr.vmem [resolvable:$true] %s20
      %26 = dma.hbm_to_vmem [thread:$0]  %s1, 256, %s21, [#allocation5], 128, 128, 8
    $region5: #{_embedding_lookup_pallas.1} parent=1 // pred_fallthru
      _
    // Predicated region
    $region6: #{_embedding_lookup_pallas.1} parent=1 // pred_check
      _
    $region7: #{_embedding_lookup_pallas.1} parent=1 // pred_check_branch
      %28 = sbr.rel (0) target = $region9
    $region8: #{_embedding_lookup_pallas.1} parent=1 // pred_region
      %29 = dma.done [#allocation5], 256
    $region9: #{_embedding_lookup_pallas.1} parent=1 // pred_fallthru
      _
    %s30 = smul.u32 0, 8
    %s31 = sld [smem:[#allocation3 + %s30]]
    %s32 = scalar_lea.vmem [#allocation4], %s31
    %v33 = vld [vmem:[%s32] sm:$0x1]
    %34 = vst [vmem:[#allocation7] sm:$0x1] %v33
    %s35 = sadd.s32 %s30, 1
    %s36 = sld [smem:[#allocation3 + %s35]]
    %s37 = scalar_lea.vmem [#allocation4], %s36
    %v38 = vld [vmem:[%s37] sm:$0x1]
    %39 = vst [vmem:[#allocation7 + $0x1] sm:$0x1] %v38
    %s40 = sadd.s32 %s30, 2
    %s41 = sld [smem:[#allocation3 + %s40]]
    %s42 = scalar_lea.vmem [#allocation4], %s41
    %v43 = vld [vmem:[%s42] sm:$0x1]
    %44 = vst [vmem:[#allocation7 + $0x2] sm:$0x1] %v43
    %s45 = sadd.s32 %s30, 3
    %s46 = sld [smem:[#allocation3 + %s45]]
    %s47 = scalar_lea.vmem [#allocation4], %s46
    %v48 = vld [vmem:[%s47] sm:$0x1]
    %49 = vst [vmem:[#allocation7 + $0x3] sm:$0x1] %v48
    %s50 = sadd.s32 %s30, 4
    %s51 = sld [smem:[#allocation3 + %s50]]
    %s52 = scalar_lea.vmem [#allocation4], %s51
    %v53 = vld [vmem:[%s52] sm:$0x1]
    %54 = vst [vmem:[#allocation7 + $0x4] sm:$0x1] %v53
    %s55 = sadd.s32 %s30, 5
    %s56 = sld [smem:[#allocation3 + %s55]]
    %s57 = scalar_lea.vmem [#allocation4], %s56
    %v58 = vld [vmem:[%s57] sm:$0x1]
    %59 = vst [vmem:[#allocation7 + $0x5] sm:$0x1] %v58
    %s60 = sadd.s32 %s30, 6
    %s61 = sld [smem:[#allocation3 + %s60]]
    %s62 = scalar_lea.vmem [#allocation4], %s61
    %v63 = vld [vmem:[%s62] sm:$0x1]
    %64 = vst [vmem:[#allocation7 + $0x6] sm:$0x1] %v63
    %s65 = sadd.s32 %s30, 7
    %s66 = sld [smem:[#allocation3 + %s65]]
    %s67 = scalar_lea.vmem [#allocation4], %s66
    %v68 = vld [vmem:[%s67] sm:$0x1]
    %69 = vst [vmem:[#allocation7 + $0x7] sm:$0x1] %v68
    // Predicated region
    $region10: #{_embedding_lookup_pallas.1} parent=1 // pred_check
      _
    $region11: #{_embedding_lookup_pallas.1} parent=1 // pred_check_branch
      %71 = sbr.rel (0) target = $region13
    $region12: #{_embedding_lookup_pallas.1} parent=1 // pred_region
      %s73 = ssub.s32 128, 128
      %74 = vsyncadd [#allocation6], %s73
      %s76 = sshll.u32 [#allocation7], 4
      %s77 = int_to_ptr.vmem [resolvable:$true] %s76
      %79 = dma.vmem_to_hbm [thread:$0]  %s77, 128, %s2, [#allocation6]
    $region13: #{_embedding_lookup_pallas.1} parent=1 // pred_fallthru
      _
    // Predicated region
    $region14: #{_embedding_lookup_pallas.1} parent=1 // pred_check
      _
    $region15: #{_embedding_lookup_pallas.1} parent=1 // pred_check_branch
      %81 = sbr.rel (0) target = $region17
    $region16: #{_embedding_lookup_pallas.1} parent=1 // pred_region
      %82 = dma.done [#allocation6], 128
    $region17: #{_embedding_lookup_pallas.1} parent=1 // pred_fallthru
      _
    %83 = vsyncpa [#allocation5], 1
    %84 = vsyncpa [#allocation6], 1

</llo_original>
